<compile_context>
chip_gen: v7x
topology: tpu7x:2x2x1
jax: 0.10.0
libtpu: 0.0.40
codegen_flags: <defaults>
</compile_context>

<pallas_src>
import functools

import jax
import jax.numpy as jnp
from jax.experimental import pallas as pl
from jax.experimental.pallas import tpu as pltpu  # noqa: F401  (TPU backend / future tuning)


def kozmo_kernel(x_ref, wcomb_ref, bcomb_ref, w1_t_ref,
                 wd_t_ref, bd_ref, wl_t_ref, bl_ref,
                 matrix_ref, logits_ref, *, batch, seq):
    # x_ref      : (B*S, D)  flattened hidden states
    # wcomb_ref  : (D, K)    Wmap @ decode_layer1^T  (fused mapping+decode)
    # bcomb_ref  : (1, K)    bmap @ decode_layer1^T
    # w1_t_ref   : (K, K)    linear1 weight^T (no bias)
    # wd_t_ref   : (K, K)    dense weight^T
    # bd_ref     : (1, K)
    # wl_t_ref   : (K, LP)   linear weight^T zero-padded to LP=128 lanes
    # bl_ref     : (1, LP)
    # matrix_ref : (B*S, K)  matrix_kozmo_hidden1 (flattened)
    # logits_ref : (B, LP)   pooled_output after final linear (lane-padded)
    x = x_ref[...].astype(jnp.float32)                                       # (B*S, D)

    # fused graph.mapping + decode_layer1
    kozmo = jnp.dot(x, wcomb_ref[...],
                    preferred_element_type=jnp.float32) + bcomb_ref[...]     # (B*S, K)

    # LayerNorm over K, no affine, eps=1e-5 (torch default)
    mean = jnp.mean(kozmo, axis=-1, keepdims=True)
    var = jnp.mean((kozmo - mean) ** 2, axis=-1, keepdims=True)
    ln = (kozmo - mean) * jax.lax.rsqrt(var + 1e-5)                          # (B*S, K)

    # linear1 (no bias)
    matrix = jnp.dot(ln, w1_t_ref[...],
                     preferred_element_type=jnp.float32)                     # (B*S, K)
    matrix_ref[...] = matrix.astype(matrix_ref.dtype)

    # pooler: first token of each batch element -> dense -> tanh -> (dropout=id) -> linear
    first = jnp.concatenate(
        [matrix[b * seq:b * seq + 1, :] for b in range(batch)], axis=0)      # (B, K)
    pooled = jnp.tanh(jnp.dot(first, wd_t_ref[...],
                              preferred_element_type=jnp.float32)
                      + bd_ref[...])                                         # (B, K)
    logits = jnp.dot(pooled, wl_t_ref[...],
                     preferred_element_type=jnp.float32) + bl_ref[...]       # (B, LP)
    logits_ref[...] = logits.astype(logits_ref.dtype)


def prepare_params(params, lane_pad=128):
    """One-time weight preprocessing (outside the per-call path):
    transpose, fuse mapping+decode, lane-pad the classification head."""
    wmap, bmap, dec = params["wmap"], params["bmap"], params["dec"]
    w1, wd, bd, wl, bl = (params["w1"], params["wd"], params["bd"],
                          params["wl"], params["bl"])
    dec_t = dec.T                                       # (Hm, K)
    wcomb = wmap @ dec_t                                # (D, K)
    bcomb = bmap.reshape(1, -1) @ dec_t                 # (1, K)
    K = dec.shape[0]
    L = wl.shape[0]
    LP = max(lane_pad, L)
    wl_t_pad = jnp.zeros((K, LP), wl.dtype).at[:, :L].set(wl.T)
    bl_pad = jnp.zeros((1, LP), bl.dtype).at[0, :L].set(bl)
    return {
        "wcomb": wcomb, "bcomb": bcomb,
        "w1_t": w1.T, "wd_t": wd.T, "bd": bd.reshape(1, -1),
        "wl_t": wl_t_pad, "bl": bl_pad,
        "num_labels": L,
    }


def kozmo_classifier(hidden_states, prep):
    """hidden_states: [B, S, D] float32.
    Returns (logits [B, L], matrix_kozmo_hidden1 [B, S, K])."""
    B, S, D = hidden_states.shape
    K = prep["wcomb"].shape[1]
    LP = prep["wl_t"].shape[1]
    L = prep["num_labels"]

    x2d = hidden_states.reshape(B * S, D)

    matrix2d, logits_pad = pl.pallas_call(
        functools.partial(kozmo_kernel, batch=B, seq=S),
        out_shape=(
            jax.ShapeDtypeStruct((B * S, K), jnp.float32),   # matrix_kozmo_hidden1 (flat)
            jax.ShapeDtypeStruct((B, LP), jnp.float32),      # lane-dense padded logits
        ),
        # single kernel invocation, everything resident in VMEM (full-array blocks)
    )(x2d, prep["wcomb"], prep["bcomb"], prep["w1_t"],
      prep["wd_t"], prep["bd"], prep["wl_t"], prep["bl"])

    logits = logits_pad[:, :L]
    matrix = matrix2d.reshape(B, S, K)
    return logits, matrix


def _reference(hidden_states, params):
    """Pure-JAX reference mirroring the PyTorch forward (un-fused form)."""
    mapped = hidden_states @ params["wmap"] + params["bmap"]            # graph.mapping
    kozmo = jnp.einsum("kh,bsh->bsk", params["dec"], mapped)            # decode_layer1 matmul
    mean = jnp.mean(kozmo, axis=-1, keepdims=True)
    var = jnp.mean((kozmo - mean) ** 2, axis=-1, keepdims=True)
    ln = (kozmo - mean) / jnp.sqrt(var + 1e-5)
    matrix = ln @ params["w1"].T
    first = matrix[:, 0]
    pooled = jnp.tanh(first @ params["wd"].T + params["bd"])
    logits = pooled @ params["wl"].T + params["bl"]
    return logits, matrix


if __name__ == "__main__":
    # Small config: B=2, S=8, D=32 (model hidden), Hm=32 (mapped dim == decode cols),
    # K=semaspace=128 (== decode_layer1.shape[0]), num_labels=4.
    B, S, D, Hm, K, L = 2, 8, 32, 32, 128, 4

    key = jax.random.PRNGKey(0)
    ks = jax.random.split(key, 9)
    params = {
        "wmap": jax.random.normal(ks[0], (D, Hm), jnp.float32) * 0.1,
        "bmap": jax.random.normal(ks[1], (Hm,), jnp.float32) * 0.1,
        "dec":  jax.random.normal(ks[2], (K, Hm), jnp.float32) * 0.1,   # decode_layer1
        "w1":   jax.random.normal(ks[3], (K, K), jnp.float32) * 0.05,   # linear1 (no bias)
        "wd":   jax.random.normal(ks[4], (K, K), jnp.float32) * 0.05,   # dense
        "bd":   jax.random.normal(ks[5], (K,), jnp.float32) * 0.1,
        "wl":   jax.random.normal(ks[6], (L, K), jnp.float32) * 0.05,   # linear
        "bl":   jax.random.normal(ks[7], (L,), jnp.float32) * 0.1,
    }
    hidden_states = jax.random.normal(ks[8], (B, S, D), jnp.float32)

    prep = prepare_params(params)                       # one-time weight prep
    logits, matrix = kozmo_classifier(hidden_states, prep)
    jax.block_until_ready((logits, matrix))

    ref_logits, ref_matrix = _reference(hidden_states, params)
    assert logits.shape == (B, L) and matrix.shape == (B, S, K)
    assert jnp.allclose(logits, ref_logits, atol=1e-4, rtol=1e-4)
    assert jnp.allclose(matrix, ref_matrix, atol=1e-4, rtol=1e-4)

    print("KERNEL_OK")
</pallas_src>

<mosaic_0001>
module attributes {stable_mosaic.version = 11 : i64} {
  func.func @kozmo_kernel(%arg0: memref<16x32xf32, #tpu.memory_space<vmem>>, %arg1: memref<32x128xf32, #tpu.memory_space<vmem>>, %arg2: memref<1x128xf32, #tpu.memory_space<vmem>>, %arg3: memref<128x128xf32, #tpu.memory_space<vmem>>, %arg4: memref<128x128xf32, #tpu.memory_space<vmem>>, %arg5: memref<1x128xf32, #tpu.memory_space<vmem>>, %arg6: memref<128x128xf32, #tpu.memory_space<vmem>>, %arg7: memref<1x128xf32, #tpu.memory_space<vmem>>, %arg8: memref<16x128xf32, #tpu.memory_space<vmem>>, %arg9: memref<2x128xf32, #tpu.memory_space<vmem>>) attributes {dimension_semantics = [], scalar_prefetch = 0 : i64, scratch_operands = 0 : i64, tpu.core_type = #tpu.core_type<tc>} {
    %c0 = arith.constant 0 : index
    %c0_0 = arith.constant 0 : index
    %0 = vector.load %arg0[%c0, %c0_0] : memref<16x32xf32, #tpu.memory_space<vmem>>, vector<16x32xf32>
    %c0_1 = arith.constant 0 : index
    %c0_2 = arith.constant 0 : index
    %1 = vector.load %arg1[%c0_1, %c0_2] : memref<32x128xf32, #tpu.memory_space<vmem>>, vector<32x128xf32>
    %cst = arith.constant dense<0.000000e+00> : vector<16x128xf32>
    %2 = tpu.matmul %0, %1, %cst {dimension_numbers = #tpu.dot_dimension_numbers<[1], [0], [0], [1], [0, 0, 1, 1], [], []>} : vector<16x32xf32>, vector<32x128xf32>, vector<16x128xf32> -> vector<16x128xf32>
    %c0_3 = arith.constant 0 : index
    %c0_4 = arith.constant 0 : index
    %3 = vector.load %arg2[%c0_3, %c0_4] : memref<1x128xf32, #tpu.memory_space<vmem>>, vector<1x128xf32>
    %4 = vector.broadcast %3 : vector<1x128xf32> to vector<16x128xf32>
    %5 = arith.addf %2, %4 : vector<16x128xf32>
    %cst_5 = arith.constant dense<0.000000e+00> : vector<16xf32>
    %6 = vector.multi_reduction <add>, %5, %cst_5 [1] : vector<16x128xf32> to vector<16xf32>
    %7 = vector.shape_cast %6 : vector<16xf32> to vector<16x1xf32>
    %cst_6 = arith.constant 1.280000e+02 : f32
    %8 = vector.broadcast %cst_6 : f32 to vector<16x1xf32>
    %9 = arith.divf %7, %8 : vector<16x1xf32>
    %10 = vector.broadcast %9 : vector<16x1xf32> to vector<16x128xf32>
    %11 = arith.subf %5, %10 : vector<16x128xf32>
    %12 = arith.mulf %11, %11 : vector<16x128xf32>
    %cst_7 = arith.constant dense<0.000000e+00> : vector<16xf32>
    %13 = vector.multi_reduction <add>, %12, %cst_7 [1] : vector<16x128xf32> to vector<16xf32>
    %14 = vector.shape_cast %13 : vector<16xf32> to vector<16x1xf32>
    %cst_8 = arith.constant 1.280000e+02 : f32
    %15 = vector.broadcast %cst_8 : f32 to vector<16x1xf32>
    %16 = arith.divf %14, %15 : vector<16x1xf32>
    %17 = vector.broadcast %9 : vector<16x1xf32> to vector<16x128xf32>
    %18 = arith.subf %5, %17 : vector<16x128xf32>
    %cst_9 = arith.constant 9.99999974E-6 : f32
    %19 = vector.broadcast %cst_9 : f32 to vector<16x1xf32>
    %20 = arith.addf %16, %19 : vector<16x1xf32>
    %21 = math.rsqrt %20 : vector<16x1xf32>
    %22 = vector.broadcast %21 : vector<16x1xf32> to vector<16x128xf32>
    %23 = arith.mulf %18, %22 : vector<16x128xf32>
    %c0_10 = arith.constant 0 : index
    %c0_11 = arith.constant 0 : index
    %24 = vector.load %arg3[%c0_10, %c0_11] : memref<128x128xf32, #tpu.memory_space<vmem>>, vector<128x128xf32>
    %cst_12 = arith.constant dense<0.000000e+00> : vector<16x128xf32>
    %25 = tpu.matmul %23, %24, %cst_12 {dimension_numbers = #tpu.dot_dimension_numbers<[1], [0], [0], [1], [0, 0, 1, 1], [], []>} : vector<16x128xf32>, vector<128x128xf32>, vector<16x128xf32> -> vector<16x128xf32>
    %c0_13 = arith.constant 0 : index
    %c0_14 = arith.constant 0 : index
    %26 = vector.load %arg8[%c0_13, %c0_14] : memref<16x128xf32, #tpu.memory_space<vmem>>, vector<16x128xf32>
    tpu.vector_store %arg8[%c0_13, %c0_14], %25 {strides = array<i32>} : memref<16x128xf32, #tpu.memory_space<vmem>>, vector<16x128xf32>,
    %27 = vector.extract_strided_slice %25 {offsets = [0, 0], sizes = [1, 128], strides = [1, 1]} : vector<16x128xf32> to vector<1x128xf32>
    %28 = vector.extract_strided_slice %25 {offsets = [8, 0], sizes = [1, 128], strides = [1, 1]} : vector<16x128xf32> to vector<1x128xf32>
    %29 = tpu.concatenate %27, %28 in 0 : vector<1x128xf32>, vector<1x128xf32> -> vector<2x128xf32>
    %c0_15 = arith.constant 0 : index
    %c0_16 = arith.constant 0 : index
    %30 = vector.load %arg4[%c0_15, %c0_16] : memref<128x128xf32, #tpu.memory_space<vmem>>, vector<128x128xf32>
    %cst_17 = arith.constant dense<0.000000e+00> : vector<2x128xf32>
    %31 = tpu.matmul %29, %30, %cst_17 {dimension_numbers = #tpu.dot_dimension_numbers<[1], [0], [0], [1], [0, 0, 1, 1], [], []>} : vector<2x128xf32>, vector<128x128xf32>, vector<2x128xf32> -> vector<2x128xf32>
    %c0_18 = arith.constant 0 : index
    %c0_19 = arith.constant 0 : index
    %32 = vector.load %arg5[%c0_18, %c0_19] : memref<1x128xf32, #tpu.memory_space<vmem>>, vector<1x128xf32>
    %33 = vector.broadcast %32 : vector<1x128xf32> to vector<2x128xf32>
    %34 = arith.addf %31, %33 : vector<2x128xf32>
    %35 = math.tanh %34 : vector<2x128xf32>
    %c0_20 = arith.constant 0 : index
    %c0_21 = arith.constant 0 : index
    %36 = vector.load %arg6[%c0_20, %c0_21] : memref<128x128xf32, #tpu.memory_space<vmem>>, vector<128x128xf32>
    %cst_22 = arith.constant dense<0.000000e+00> : vector<2x128xf32>
    %37 = tpu.matmul %35, %36, %cst_22 {dimension_numbers = #tpu.dot_dimension_numbers<[1], [0], [0], [1], [0, 0, 1, 1], [], []>} : vector<2x128xf32>, vector<128x128xf32>, vector<2x128xf32> -> vector<2x128xf32>
    %c0_23 = arith.constant 0 : index
    %c0_24 = arith.constant 0 : index
    %38 = vector.load %arg7[%c0_23, %c0_24] : memref<1x128xf32, #tpu.memory_space<vmem>>, vector<1x128xf32>
    %39 = vector.broadcast %38 : vector<1x128xf32> to vector<2x128xf32>
    %40 = arith.addf %37, %39 : vector<2x128xf32>
    %c0_25 = arith.constant 0 : index
    %c0_26 = arith.constant 0 : index
    %41 = vector.load %arg9[%c0_25, %c0_26] : memref<2x128xf32, #tpu.memory_space<vmem>>, vector<2x128xf32>
    tpu.vector_store %arg9[%c0_25, %c0_26], %40 {strides = array<i32>} : memref<2x128xf32, #tpu.memory_space<vmem>>, vector<2x128xf32>,
    return
  }
}

</mosaic_0001>

<llo_original>
// kernel: tpu_custom_call.1
$region0: #{tpu_custom_call.1}
  #allocation0 [shape = 'u32[]', space=smem, size = 0x4, offset = 0x4, fixed_abs, tag = 'smem constant byte address 0x4 - core index']
  #allocation1 [shape = 'u32[144,128]{1,0:T(1,128)}', space=vmem, size = 0x12000, scoped, tag = 'internal scratch']
  %s0 = inlined_call_operand.hbm [shape: f32[16,32], index: 0, kind: input, shape index: {}]
  %s1 = inlined_call_operand.hbm [shape: f32[32,128], index: 1, kind: input, shape index: {}]
  %s2 = inlined_call_operand.vmem [shape: f32[1,128], index: 2, kind: input, shape index: {}]
  %s3 = inlined_call_operand.hbm [shape: f32[128,128], index: 3, kind: input, shape index: {}]
  %s4 = inlined_call_operand.hbm [shape: f32[128,128], index: 4, kind: input, shape index: {}]
  %s5 = inlined_call_operand.vmem [shape: f32[1,128], index: 5, kind: input, shape index: {}]
  %s6 = inlined_call_operand.hbm [shape: f32[128,128], index: 6, kind: input, shape index: {}]
  %s7 = inlined_call_operand.vmem [shape: f32[1,128], index: 7, kind: input, shape index: {}]
  %s8 = inlined_call_operand.hbm [shape: f32[16,128], index: 8, kind: output, shape index: {0}]
  %s9 = inlined_call_operand.hbm [shape: f32[2,128], index: 9, kind: output, shape index: {1}]
  %10 = xla_tuple %s8, %s9
  %s11 = sld [smem:[#allocation0]]
  $region70: #{tpu_custom_call.1} parent=0
    _
  %s13 = ssub.s32 1, %s11
  %s14 = scalar_select 0, %s13, %s11
  $region1: #{tpu_custom_call.1} parent=0
    #allocation2 [shape = 'u8[8192]{0}', space=vmem, size = 0x2000, scoped, tag = 'input window, operand 0, single buffered']
    #allocation3 [shape = 's32[1]{0}', space=sflag, size = 0x4, scoped, tag = 'scoped memory for tpu_custom_call.1']
    #allocation4 [shape = 's32[1]{0}', space=sflag, size = 0x4, scoped, tag = 'scoped memory for tpu_custom_call.1']
    #allocation5 [shape = 'u8[16384]{0}', space=vmem, size = 0x4000, scoped, tag = 'input window, operand 1, single buffered']
    #allocation6 [shape = 's32[1]{0}', space=sflag, size = 0x4, scoped, tag = 'scoped memory for tpu_custom_call.1']
    #allocation7 [shape = 'u8[65536]{0}', space=vmem, size = 0x10000, scoped, tag = 'input window, operand 3, single buffered']
    #allocation8 [shape = 'u8[65536]{0}', space=vmem, size = 0x10000, scoped, tag = 'input window, operand 4, single buffered']
    #allocation9 [shape = 's32[1]{0}', space=sflag, size = 0x4, scoped, tag = 'scoped memory for tpu_custom_call.1']
    #allocation10 [shape = 'u8[65536]{0}', space=vmem, size = 0x10000, scoped, tag = 'input window, operand 6, single buffered']
    #allocation11 [shape = 'u8[8192]{0}', space=vmem, size = 0x2000, scoped, tag = 'output window, operand 0, single buffered']
    #allocation12 [shape = 'u8[1024]{0}', space=vmem, size = 0x400, scoped, tag = 'output window, operand 1, single buffered']
    #allocation13 [shape = 's32[1]{0}', space=sflag, size = 0x4, scoped, tag = 'scoped memory for tpu_custom_call.1']
    %15 = vsyncpa [#allocation3], 0
    %16 = vsyncpa [#allocation6], 0
    %17 = vsyncpa [#allocation9], 0
    %18 = vsyncpa [#allocation4], 0
    %19 = vsyncpa [#allocation13], 0
    // Predicated region
    $region2: #{tpu_custom_call.1} parent=1 // pred_check
      _
    $region3: #{tpu_custom_call.1} parent=1 // pred_check_branch
      %21 = sbr.rel (0) target = $region5
    $region4: #{tpu_custom_call.1} parent=1 // pred_region
      %s23 = ssub.s32 256, 256
      %24 = vsyncadd [#allocation3], %s23
      %s25 = sshll.u32 [#allocation2], 4
      %s26 = int_to_ptr.vmem [resolvable:$true] %s25
      %31 = dma.hbm_to_vmem [thread:$0]  %s0, 256, %s26, [#allocation3], 128, 128, 8
    $region5: #{tpu_custom_call.1} parent=1 // pred_fallthru
      _
    // Predicated region
    $region6: #{tpu_custom_call.1} parent=1 // pred_check
      _
    $region7: #{tpu_custom_call.1} parent=1 // pred_check_branch
      %33 = sbr.rel (0) target = $region9
    $region8: #{tpu_custom_call.1} parent=1 // pred_region
      %s35 = ssub.s32 512, 512
      %36 = vsyncadd [#allocation6], %s35
      %s37 = sshll.u32 [#allocation5], 4
      %s38 = int_to_ptr.vmem [resolvable:$true] %s37
      %43 = dma.hbm_to_vmem [thread:$0]  %s1, 512, %s38, [#allocation6], 128, 128, 8
    $region9: #{tpu_custom_call.1} parent=1 // pred_fallthru
      _
    // Predicated region
    $region10: #{tpu_custom_call.1} parent=1 // pred_check
      _
    $region11: #{tpu_custom_call.1} parent=1 // pred_check_branch
      %45 = sbr.rel (0) target = $region13
    $region12: #{tpu_custom_call.1} parent=1 // pred_region
      _
    $region13: #{tpu_custom_call.1} parent=1 // pred_fallthru
      _
    // Predicated region
    $region14: #{tpu_custom_call.1} parent=1 // pred_check
      _
    $region15: #{tpu_custom_call.1} parent=1 // pred_check_branch
      %47 = sbr.rel (0) target = $region17
    $region16: #{tpu_custom_call.1} parent=1 // pred_region
      %s49 = ssub.s32 2048, 2048
      %50 = vsyncadd [#allocation6], %s49
      %s51 = sshll.u32 [#allocation7], 4
      %s52 = int_to_ptr.vmem [resolvable:$true] %s51
      %57 = dma.hbm_to_vmem [thread:$0]  %s3, 2048, %s52, [#allocation6], 128, 128, 8
    $region17: #{tpu_custom_call.1} parent=1 // pred_fallthru
      _
    // Predicated region
    $region18: #{tpu_custom_call.1} parent=1 // pred_check
      _
    $region19: #{tpu_custom_call.1} parent=1 // pred_check_branch
      %59 = sbr.rel (0) target = $region21
    $region20: #{tpu_custom_call.1} parent=1 // pred_region
      %s61 = ssub.s32 2048, 2048
      %62 = vsyncadd [#allocation9], %s61
      %s63 = sshll.u32 [#allocation8], 4
      %s64 = int_to_ptr.vmem [resolvable:$true] %s63
      %69 = dma.hbm_to_vmem [thread:$0]  %s4, 2048, %s64, [#allocation9], 128, 128, 8
    $region21: #{tpu_custom_call.1} parent=1 // pred_fallthru
      _
    // Predicated region
    $region22: #{tpu_custom_call.1} parent=1 // pred_check
      _
    $region23: #{tpu_custom_call.1} parent=1 // pred_check_branch
      %71 = sbr.rel (0) target = $region25
    $region24: #{tpu_custom_call.1} parent=1 // pred_region
      _
    $region25: #{tpu_custom_call.1} parent=1 // pred_fallthru
      _
    // Predicated region
    $region26: #{tpu_custom_call.1} parent=1 // pred_check
      _
    $region27: #{tpu_custom_call.1} parent=1 // pred_check_branch
      %73 = sbr.rel (0) target = $region29
    $region28: #{tpu_custom_call.1} parent=1 // pred_region
      %s75 = ssub.s32 2048, 2048
      %76 = vsyncadd [#allocation9], %s75
      %s77 = sshll.u32 [#allocation10], 4
      %s78 = int_to_ptr.vmem [resolvable:$true] %s77
      %83 = dma.hbm_to_vmem [thread:$0]  %s6, 2048, %s78, [#allocation9], 128, 128, 8
    $region29: #{tpu_custom_call.1} parent=1 // pred_fallthru
      _
    // Predicated region
    $region30: #{tpu_custom_call.1} parent=1 // pred_check
      _
    $region31: #{tpu_custom_call.1} parent=1 // pred_check_branch
      %85 = sbr.rel (0) target = $region33
    $region32: #{tpu_custom_call.1} parent=1 // pred_region
      _
    $region33: #{tpu_custom_call.1} parent=1 // pred_fallthru
      _
    // Predicated region
    $region34: #{tpu_custom_call.1} parent=1 // pred_check
      _
    $region35: #{tpu_custom_call.1} parent=1 // pred_check_branch
      %87 = sbr.rel (0) target = $region37
    $region36: #{tpu_custom_call.1} parent=1 // pred_region
      %88 = dma.done [#allocation3], 256
    $region37: #{tpu_custom_call.1} parent=1 // pred_fallthru
      _
    // Predicated region
    $region38: #{tpu_custom_call.1} parent=1 // pred_check
      _
    $region39: #{tpu_custom_call.1} parent=1 // pred_check_branch
      %90 = sbr.rel (0) target = $region41
    $region40: #{tpu_custom_call.1} parent=1 // pred_region
      %91 = dma.done [#allocation6], 512
    $region41: #{tpu_custom_call.1} parent=1 // pred_fallthru
      _
    // Predicated region
    $region42: #{tpu_custom_call.1} parent=1 // pred_check
      _
    $region43: #{tpu_custom_call.1} parent=1 // pred_check_branch
      %93 = sbr.rel (0) target = $region45
    $region44: #{tpu_custom_call.1} parent=1 // pred_region
      %94 = dma.done [#allocation6], 2048
    $region45: #{tpu_custom_call.1} parent=1 // pred_fallthru
      _
    // Predicated region
    $region46: #{tpu_custom_call.1} parent=1 // pred_check
      _
    $region47: #{tpu_custom_call.1} parent=1 // pred_check_branch
      %96 = sbr.rel (0) target = $region49
    $region48: #{tpu_custom_call.1} parent=1 // pred_region
      %97 = dma.done [#allocation9], 2048
    $region49: #{tpu_custom_call.1} parent=1 // pred_fallthru
      _
    // Predicated region
    $region50: #{tpu_custom_call.1} parent=1 // pred_check
      _
    $region51: #{tpu_custom_call.1} parent=1 // pred_check_branch
      %99 = sbr.rel (0) target = $region53
    $region52: #{tpu_custom_call.1} parent=1 // pred_region
      %100 = dma.done [#allocation9], 2048
    $region53: #{tpu_custom_call.1} parent=1 // pred_fallthru
      _
    %v101 = vld [vmem:[#allocation2] sm:$0xff]
    %v102 = vld [vmem:[#allocation2 + $0x8] sm:$0xff]
    %v103 = vld [vmem:[#allocation5] sm:$0xff]
    %v104 = vld [vmem:[#allocation5 + $0x8] sm:$0xff]
    %v105 = vld [vmem:[#allocation5 + $0x10] sm:$0xff]
    %v106 = vld [vmem:[#allocation5 + $0x18] sm:$0xff]
    %v107 = vld [vmem:[%s2] sm:$0x1]
    %v109 = vlaneseq
    %v110 = vshrl.u32 %v109, 7
    %v111 = vsub.s32 0, %v110
    %v112 = vrot.slane %v107, %v111
    %vm114 = vcmask 261120
    %v116 = vsel %vm114, %v101, 0
    %v119 = vsel %vm114, %v102, 0
    %121 = vmatprep.subr.mxu0 0.0
    %122 = vmatpush1.msra.mxu0 %v103
    %123 = vmatprep.subr.mxu0 0.0
    %124 = vmatpush1.msra.mxu0 %v104
    %125 = vmatprep.subr.mxu0 0.0
    %126 = vmatpush1.msra.mxu0 %v105
    %127 = vmatprep.subr.mxu0 0.0
    %128 = vmatpush1.msra.mxu0 %v106
    %129 = vmatprep.subr.mxu0 0.0
    %130 = vmatpush1.msra.mxu0 0.0
    %131 = vmatprep.subr.mxu0 0.0
    %132 = vmatpush1.msra.mxu0 0.0
    %133 = vmatprep.subr.mxu0 0.0
    %134 = vmatpush1.msra.mxu0 0.0
    %135 = vmatprep.subr.mxu0 0.0
    %136 = vmatpush1.msra.mxu0 0.0
    %137 = vmatprep.subr.mxu0 0.0
    %138 = vmatpush1.msra.mxu0 0.0
    %139 = vmatprep.subr.mxu0 0.0
    %140 = vmatpush1.msra.mxu0 0.0
    %141 = vmatprep.subr.mxu0 0.0
    %142 = vmatpush1.msra.mxu0 0.0
    %143 = vmatprep.subr.mxu0 0.0
    %144 = vmatpush1.msra.mxu0 0.0
    %145 = vmatprep.subr.mxu0 0.0
    %146 = vmatpush1.msra.mxu0 0.0
    %147 = vmatprep.subr.mxu0 0.0
    %148 = vmatpush1.msra.mxu0 0.0
    %149 = vmatprep.subr.mxu0 0.0
    %150 = vmatpush1.msra.mxu0 0.0
    %151 = vmatprep.subr.mxu0 0.0
    %152 = vmatpush1.msra.mxu0 0.0
    %153 = vmatprep.subr.mxu0 0.0
    %154 = vmatpush1.msra.mxu0 0.0
    %155 = vmatprep.subr.mxu0 0.0
    %156 = vmatpush1.msra.mxu0 0.0
    %157 = vmatprep.subr.mxu0 0.0
    %158 = vmatpush1.msra.mxu0 0.0
    %159 = vmatprep.subr.mxu0 0.0
    %160 = vmatpush1.msra.mxu0 0.0
    %161 = vmatprep.subr.mxu0 0.0
    %162 = vmatpush1.msra.mxu0 0.0
    %163 = vmatprep.subr.mxu0 0.0
    %164 = vmatpush1.msra.mxu0 0.0
    %165 = vmatprep.subr.mxu0 0.0
    %166 = vmatpush1.msra.mxu0 0.0
    %167 = vmatprep.subr.mxu0 0.0
    %168 = vmatpush1.msra.mxu0 0.0
    %169 = vmatprep.subr.mxu0 0.0
    %170 = vmatpush1.msra.mxu0 0.0
    %171 = vmatprep.subr.mxu0 0.0
    %172 = vmatpush1.msra.mxu0 0.0
    %173 = vmatprep.subr.mxu0 0.0
    %174 = vmatpush1.msra.mxu0 0.0
    %175 = vmatprep.subr.mxu0 0.0
    %176 = vmatpush1.msra.mxu0 0.0
    %177 = vmatprep.subr.mxu0 0.0
    %178 = vmatpush1.msra.mxu0 0.0
    %179 = vmatprep.subr.mxu0 0.0
    %180 = vmatpush1.msra.mxu0 0.0
    %181 = vmatprep.subr.mxu0 0.0
    %182 = vmatpush1.msra.mxu0 0.0
    %183 = vmatprep.subr.mxu0 0.0
    %184 = vmatpush1.msra.mxu0 0.0
    %185 = vmatprep.mubr.f32.mxu0 0.0
    %186 = vmatmul.mubr.f32.gmra.mrb[0].mxu0 %v116
    %v187 = vpop.f32.mrb[0].mxu0
    %v188 = vadd.f32 %v112, %v187
    %v189 = vpop.f32.mrb[0].mxu0
    %190 = vmatprep.mubr.f32.mxu0 0.0
    %191 = vmatmul.mubr.f32.gmra.mrb[0].mxu0 %v119
    %v192 = vpop.f32.mrb[0].mxu0
    %v193 = vadd.f32 %v112, %v192
    %v194 = vpop.f32.mrb[0].mxu0
    %195 = vdwg.mxu0
    %196 = vadd.xlane.f32.xlu0 %v188
    %v197 = vpop.xlane.xlu0 %196
    %198 = vadd.xlane.f32.xlu0 %v193
    %v199 = vpop.xlane.xlu0 %198
    %v200 = vrcp.pop 128.0
    %v201 = vmul.f32 %v197, %v200
    %v202 = vmul.f32 %v199, %v200
    %v203 = vsub.f32 %v188, %v201
    %v204 = vsub.f32 %v193, %v202
    %v205 = vmul.f32 %v203, %v203
    %v206 = vmul.f32 %v204, %v204
    %207 = vadd.xlane.f32.xlu0 %v205
    %v208 = vpop.xlane.xlu0 %207
    %209 = vadd.xlane.f32.xlu0 %v206
    %v210 = vpop.xlane.xlu0 %209
    %v211 = vmul.f32 %v208, %v200
    %v212 = vmul.f32 %v210, %v200
    %v213 = vadd.f32 %v211, 1e-05
    %v214 = vadd.f32 %v212, 1e-05
    %v215 = vrsqrt.pop %v213
    %v216 = vrsqrt.pop %v214
    %v217 = vmul.f32 %v203, %v215
    %v218 = vmul.f32 %v204, %v216
    %v219 = vld [vmem:[#allocation7] sm:$0xff]
    %v220 = vld [vmem:[#allocation7 + $0x8] sm:$0xff]
    %v221 = vld [vmem:[#allocation7 + $0x10] sm:$0xff]
    %v222 = vld [vmem:[#allocation7 + $0x18] sm:$0xff]
    %v223 = vld [vmem:[#allocation7 + $0x20] sm:$0xff]
    %v224 = vld [vmem:[#allocation7 + $0x28] sm:$0xff]
    %v225 = vld [vmem:[#allocation7 + $0x30] sm:$0xff]
    %v226 = vld [vmem:[#allocation7 + $0x38] sm:$0xff]
    %v227 = vld [vmem:[#allocation7 + $0x40] sm:$0xff]
    %v228 = vld [vmem:[#allocation7 + $0x48] sm:$0xff]
    %v229 = vld [vmem:[#allocation7 + $0x50] sm:$0xff]
    %v230 = vld [vmem:[#allocation7 + $0x58] sm:$0xff]
    %v231 = vld [vmem:[#allocation7 + $0x60] sm:$0xff]
    %v232 = vld [vmem:[#allocation7 + $0x68] sm:$0xff]
    %v233 = vld [vmem:[#allocation7 + $0x70] sm:$0xff]
    %v234 = vld [vmem:[#allocation7 + $0x78] sm:$0xff]
    %235 = vmatprep.subr.mxu0 0.0
    %236 = vmatpush1.msra.mxu0 %v219
    %237 = vmatprep.subr.mxu0 0.0
    %238 = vmatpush1.msra.mxu0 %v220
    %239 = vmatprep.subr.mxu0 0.0
    %240 = vmatpush1.msra.mxu0 %v221
    %241 = vmatprep.subr.mxu0 0.0
    %242 = vmatpush1.msra.mxu0 %v222
    %243 = vmatprep.subr.mxu0 0.0
    %244 = vmatpush1.msra.mxu0 %v223
    %245 = vmatprep.subr.mxu0 0.0
    %246 = vmatpush1.msra.mxu0 %v224
    %247 = vmatprep.subr.mxu0 0.0
    %248 = vmatpush1.msra.mxu0 %v225
    %249 = vmatprep.subr.mxu0 0.0
    %250 = vmatpush1.msra.mxu0 %v226
    %251 = vmatprep.subr.mxu0 0.0
    %252 = vmatpush1.msra.mxu0 %v227
    %253 = vmatprep.subr.mxu0 0.0
    %254 = vmatpush1.msra.mxu0 %v228
    %255 = vmatprep.subr.mxu0 0.0
    %256 = vmatpush1.msra.mxu0 %v229
    %257 = vmatprep.subr.mxu0 0.0
    %258 = vmatpush1.msra.mxu0 %v230
    %259 = vmatprep.subr.mxu0 0.0
    %260 = vmatpush1.msra.mxu0 %v231
    %261 = vmatprep.subr.mxu0 0.0
    %262 = vmatpush1.msra.mxu0 %v232
    %263 = vmatprep.subr.mxu0 0.0
    %264 = vmatpush1.msra.mxu0 %v233
    %265 = vmatprep.subr.mxu0 0.0
    %266 = vmatpush1.msra.mxu0 %v234
    %267 = vmatprep.subr.mxu0 0.0
    %268 = vmatpush1.msra.mxu0 0.0
    %269 = vmatprep.subr.mxu0 0.0
    %270 = vmatpush1.msra.mxu0 0.0
    %271 = vmatprep.subr.mxu0 0.0
    %272 = vmatpush1.msra.mxu0 0.0
    %273 = vmatprep.subr.mxu0 0.0
    %274 = vmatpush1.msra.mxu0 0.0
    %275 = vmatprep.subr.mxu0 0.0
    %276 = vmatpush1.msra.mxu0 0.0
    %277 = vmatprep.subr.mxu0 0.0
    %278 = vmatpush1.msra.mxu0 0.0
    %279 = vmatprep.subr.mxu0 0.0
    %280 = vmatpush1.msra.mxu0 0.0
    %281 = vmatprep.subr.mxu0 0.0
    %282 = vmatpush1.msra.mxu0 0.0
    %283 = vmatprep.subr.mxu0 0.0
    %284 = vmatpush1.msra.mxu0 0.0
    %285 = vmatprep.subr.mxu0 0.0
    %286 = vmatpush1.msra.mxu0 0.0
    %287 = vmatprep.subr.mxu0 0.0
    %288 = vmatpush1.msra.mxu0 0.0
    %289 = vmatprep.subr.mxu0 0.0
    %290 = vmatpush1.msra.mxu0 0.0
    %291 = vmatprep.subr.mxu0 0.0
    %292 = vmatpush1.msra.mxu0 0.0
    %293 = vmatprep.subr.mxu0 0.0
    %294 = vmatpush1.msra.mxu0 0.0
    %295 = vmatprep.subr.mxu0 0.0
    %296 = vmatpush1.msra.mxu0 0.0
    %297 = vmatprep.subr.mxu0 0.0
    %298 = vmatpush1.msra.mxu0 0.0
    %299 = vmatprep.mubr.f32.mxu0 0.0
    %300 = vmatmul.mubr.f32.gmra.mrb[0].mxu0 %v217
    %v301 = vpop.f32.mrb[0].mxu0
    %v302 = vadd.f32 0.0, %v301
    %v303 = vpop.f32.mrb[0].mxu0
    %304 = vmatprep.mubr.f32.mxu0 0.0
    %305 = vmatmul.mubr.f32.gmra.mrb[0].mxu0 %v218
    %v306 = vpop.f32.mrb[0].mxu0
    %v307 = vadd.f32 0.0, %v306
    %v308 = vpop.f32.mrb[0].mxu0
    %309 = vdwg.mxu0
    %310 = vst [vmem:[#allocation11] sm:$0xff] %v302
    %311 = vst [vmem:[#allocation11 + $0x8] sm:$0xff] %v307
    %v313 = vrot.slane %v307, 7
    %vm315 = vcmask 1040384
    %v316 = vsel %vm315, %v302, %v313
    %v317 = vld [vmem:[#allocation8] sm:$0xff]
    %v318 = vld [vmem:[#allocation8 + $0x8] sm:$0xff]
    %v319 = vld [vmem:[#allocation8 + $0x10] sm:$0xff]
    %v320 = vld [vmem:[#allocation8 + $0x18] sm:$0xff]
    %v321 = vld [vmem:[#allocation8 + $0x20] sm:$0xff]
    %v322 = vld [vmem:[#allocation8 + $0x28] sm:$0xff]
    %v323 = vld [vmem:[#allocation8 + $0x30] sm:$0xff]
    %v324 = vld [vmem:[#allocation8 + $0x38] sm:$0xff]
    %v325 = vld [vmem:[#allocation8 + $0x40] sm:$0xff]
    %v326 = vld [vmem:[#allocation8 + $0x48] sm:$0xff]
    %v327 = vld [vmem:[#allocation8 + $0x50] sm:$0xff]
    %v328 = vld [vmem:[#allocation8 + $0x58] sm:$0xff]
    %v329 = vld [vmem:[#allocation8 + $0x60] sm:$0xff]
    %v330 = vld [vmem:[#allocation8 + $0x68] sm:$0xff]
    %v331 = vld [vmem:[#allocation8 + $0x70] sm:$0xff]
    %v332 = vld [vmem:[#allocation8 + $0x78] sm:$0xff]
    %v333 = vld [vmem:[%s5] sm:$0x1]
    %v335 = vlaneseq
    %v336 = vshrl.u32 %v335, 7
    %v337 = vsub.s32 0, %v336
    %v338 = vrot.slane %v333, %v337
    %340 = vmatprep.subr.mxu0 0.0
    %341 = vmatpush1.msra.mxu0 %v317
    %342 = vmatprep.subr.mxu0 0.0
    %343 = vmatpush1.msra.mxu0 %v318
    %344 = vmatprep.subr.mxu0 0.0
    %345 = vmatpush1.msra.mxu0 %v319
    %346 = vmatprep.subr.mxu0 0.0
    %347 = vmatpush1.msra.mxu0 %v320
    %348 = vmatprep.subr.mxu0 0.0
    %349 = vmatpush1.msra.mxu0 %v321
    %350 = vmatprep.subr.mxu0 0.0
    %351 = vmatpush1.msra.mxu0 %v322
    %352 = vmatprep.subr.mxu0 0.0
    %353 = vmatpush1.msra.mxu0 %v323
    %354 = vmatprep.subr.mxu0 0.0
    %355 = vmatpush1.msra.mxu0 %v324
    %356 = vmatprep.subr.mxu0 0.0
    %357 = vmatpush1.msra.mxu0 %v325
    %358 = vmatprep.subr.mxu0 0.0
    %359 = vmatpush1.msra.mxu0 %v326
    %360 = vmatprep.subr.mxu0 0.0
    %361 = vmatpush1.msra.mxu0 %v327
    %362 = vmatprep.subr.mxu0 0.0
    %363 = vmatpush1.msra.mxu0 %v328
    %364 = vmatprep.subr.mxu0 0.0
    %365 = vmatpush1.msra.mxu0 %v329
    %366 = vmatprep.subr.mxu0 0.0
    %367 = vmatpush1.msra.mxu0 %v330
    %368 = vmatprep.subr.mxu0 0.0
    %369 = vmatpush1.msra.mxu0 %v331
    %370 = vmatprep.subr.mxu0 0.0
    %371 = vmatpush1.msra.mxu0 %v332
    %372 = vmatprep.subr.mxu0 0.0
    %373 = vmatpush1.msra.mxu0 0.0
    %374 = vmatprep.subr.mxu0 0.0
    %375 = vmatpush1.msra.mxu0 0.0
    %376 = vmatprep.subr.mxu0 0.0
    %377 = vmatpush1.msra.mxu0 0.0
    %378 = vmatprep.subr.mxu0 0.0
    %379 = vmatpush1.msra.mxu0 0.0
    %380 = vmatprep.subr.mxu0 0.0
    %381 = vmatpush1.msra.mxu0 0.0
    %382 = vmatprep.subr.mxu0 0.0
    %383 = vmatpush1.msra.mxu0 0.0
    %384 = vmatprep.subr.mxu0 0.0
    %385 = vmatpush1.msra.mxu0 0.0
    %386 = vmatprep.subr.mxu0 0.0
    %387 = vmatpush1.msra.mxu0 0.0
    %388 = vmatprep.subr.mxu0 0.0
    %389 = vmatpush1.msra.mxu0 0.0
    %390 = vmatprep.subr.mxu0 0.0
    %391 = vmatpush1.msra.mxu0 0.0
    %392 = vmatprep.subr.mxu0 0.0
    %393 = vmatpush1.msra.mxu0 0.0
    %394 = vmatprep.subr.mxu0 0.0
    %395 = vmatpush1.msra.mxu0 0.0
    %396 = vmatprep.subr.mxu0 0.0
    %397 = vmatpush1.msra.mxu0 0.0
    %398 = vmatprep.subr.mxu0 0.0
    %399 = vmatpush1.msra.mxu0 0.0
    %400 = vmatprep.subr.mxu0 0.0
    %401 = vmatpush1.msra.mxu0 0.0
    %402 = vmatprep.subr.mxu0 0.0
    %403 = vmatpush1.msra.mxu0 0.0
    %404 = vmatprep.mubr.f32.mxu0 0.0
    %405 = vmatmul.mubr.f32.gmra.mrb[0].mxu0 %v316
    %v406 = vpop.f32.mrb[0].mxu0
    %v407 = vadd.f32 %v338, %v406
    %v408 = vpop.f32.mrb[0].mxu0
    %409 = vdwg.mxu0
    %v410 = vtanh.pop %v407
    %v411 = vld [vmem:[#allocation10] sm:$0xff]
    %v412 = vld [vmem:[#allocation10 + $0x8] sm:$0xff]
    %v413 = vld [vmem:[#allocation10 + $0x10] sm:$0xff]
    %v414 = vld [vmem:[#allocation10 + $0x18] sm:$0xff]
    %v415 = vld [vmem:[#allocation10 + $0x20] sm:$0xff]
    %v416 = vld [vmem:[#allocation10 + $0x28] sm:$0xff]
    %v417 = vld [vmem:[#allocation10 + $0x30] sm:$0xff]
    %v418 = vld [vmem:[#allocation10 + $0x38] sm:$0xff]
    %v419 = vld [vmem:[#allocation10 + $0x40] sm:$0xff]
    %v420 = vld [vmem:[#allocation10 + $0x48] sm:$0xff]
    %v421 = vld [vmem:[#allocation10 + $0x50] sm:$0xff]
    %v422 = vld [vmem:[#allocation10 + $0x58] sm:$0xff]
    %v423 = vld [vmem:[#allocation10 + $0x60] sm:$0xff]
    %v424 = vld [vmem:[#allocation10 + $0x68] sm:$0xff]
    %v425 = vld [vmem:[#allocation10 + $0x70] sm:$0xff]
    %v426 = vld [vmem:[#allocation10 + $0x78] sm:$0xff]
    %v427 = vld [vmem:[%s7] sm:$0x1]
    %v429 = vlaneseq
    %v430 = vshrl.u32 %v429, 7
    %v431 = vsub.s32 0, %v430
    %v432 = vrot.slane %v427, %v431
    %434 = vmatprep.subr.mxu0 0.0
    %435 = vmatpush1.msra.mxu0 %v411
    %436 = vmatprep.subr.mxu0 0.0
    %437 = vmatpush1.msra.mxu0 %v412
    %438 = vmatprep.subr.mxu0 0.0
    %439 = vmatpush1.msra.mxu0 %v413
    %440 = vmatprep.subr.mxu0 0.0
    %441 = vmatpush1.msra.mxu0 %v414
    %442 = vmatprep.subr.mxu0 0.0
    %443 = vmatpush1.msra.mxu0 %v415
    %444 = vmatprep.subr.mxu0 0.0
    %445 = vmatpush1.msra.mxu0 %v416
    %446 = vmatprep.subr.mxu0 0.0
    %447 = vmatpush1.msra.mxu0 %v417
    %448 = vmatprep.subr.mxu0 0.0
    %449 = vmatpush1.msra.mxu0 %v418
    %450 = vmatprep.subr.mxu0 0.0
    %451 = vmatpush1.msra.mxu0 %v419
    %452 = vmatprep.subr.mxu0 0.0
    %453 = vmatpush1.msra.mxu0 %v420
    %454 = vmatprep.subr.mxu0 0.0
    %455 = vmatpush1.msra.mxu0 %v421
    %456 = vmatprep.subr.mxu0 0.0
    %457 = vmatpush1.msra.mxu0 %v422
    %458 = vmatprep.subr.mxu0 0.0
    %459 = vmatpush1.msra.mxu0 %v423
    %460 = vmatprep.subr.mxu0 0.0
    %461 = vmatpush1.msra.mxu0 %v424
    %462 = vmatprep.subr.mxu0 0.0
    %463 = vmatpush1.msra.mxu0 %v425
    %464 = vmatprep.subr.mxu0 0.0
    %465 = vmatpush1.msra.mxu0 %v426
    %466 = vmatprep.subr.mxu0 0.0
    %467 = vmatpush1.msra.mxu0 0.0
    %468 = vmatprep.subr.mxu0 0.0
    %469 = vmatpush1.msra.mxu0 0.0
    %470 = vmatprep.subr.mxu0 0.0
    %471 = vmatpush1.msra.mxu0 0.0
    %472 = vmatprep.subr.mxu0 0.0
    %473 = vmatpush1.msra.mxu0 0.0
    %474 = vmatprep.subr.mxu0 0.0
    %475 = vmatpush1.msra.mxu0 0.0
    %476 = vmatprep.subr.mxu0 0.0
    %477 = vmatpush1.msra.mxu0 0.0
    %478 = vmatprep.subr.mxu0 0.0
    %479 = vmatpush1.msra.mxu0 0.0
    %480 = vmatprep.subr.mxu0 0.0
    %481 = vmatpush1.msra.mxu0 0.0
    %482 = vmatprep.subr.mxu0 0.0
    %483 = vmatpush1.msra.mxu0 0.0
    %484 = vmatprep.subr.mxu0 0.0
    %485 = vmatpush1.msra.mxu0 0.0
    %486 = vmatprep.subr.mxu0 0.0
    %487 = vmatpush1.msra.mxu0 0.0
    %488 = vmatprep.subr.mxu0 0.0
    %489 = vmatpush1.msra.mxu0 0.0
    %490 = vmatprep.subr.mxu0 0.0
    %491 = vmatpush1.msra.mxu0 0.0
    %492 = vmatprep.subr.mxu0 0.0
    %493 = vmatpush1.msra.mxu0 0.0
    %494 = vmatprep.subr.mxu0 0.0
    %495 = vmatpush1.msra.mxu0 0.0
    %496 = vmatprep.subr.mxu0 0.0
    %497 = vmatpush1.msra.mxu0 0.0
    %498 = vmatprep.mubr.f32.mxu0 0.0
    %499 = vmatmul.mubr.f32.gmra.mrb[0].mxu0 %v410
    %v500 = vpop.f32.mrb[0].mxu0
    %v501 = vadd.f32 %v432, %v500
    %v502 = vpop.f32.mrb[0].mxu0
    %503 = vdwg.mxu0
    %504 = vst [vmem:[#allocation12] sm:$0x3] %v501
    // Predicated region
    $region54: #{tpu_custom_call.1} parent=1 // pred_check
      _
    $region55: #{tpu_custom_call.1} parent=1 // pred_check_branch
      %506 = sbr.rel (0) target = $region57
    $region56: #{tpu_custom_call.1} parent=1 // pred_region
      %s508 = ssub.s32 256, 256
      %509 = vsyncadd [#allocation4], %s508
      %s510 = sshll.u32 [#allocation11], 4
      %s511 = int_to_ptr.vmem [resolvable:$true] %s510
      %516 = dma.vmem_to_hbm [thread:$0]  %s511, 256, %s8, [#allocation4], 128, 128, 8
    $region57: #{tpu_custom_call.1} parent=1 // pred_fallthru
      _
    // Predicated region
    $region58: #{tpu_custom_call.1} parent=1 // pred_check
      _
    $region59: #{tpu_custom_call.1} parent=1 // pred_check_branch
      %518 = sbr.rel (0) target = $region61
    $region60: #{tpu_custom_call.1} parent=1 // pred_region
      %s520 = ssub.s32 32, 32
      %521 = vsyncadd [#allocation13], %s520
      %s523 = sshll.u32 [#allocation12], 4
      %s524 = int_to_ptr.vmem [resolvable:$true] %s523
      %526 = dma.vmem_to_hbm [thread:$0]  %s524, 32, %s9, [#allocation13]
    $region61: #{tpu_custom_call.1} parent=1 // pred_fallthru
      _
    // Predicated region
    $region62: #{tpu_custom_call.1} parent=1 // pred_check
      _
    $region63: #{tpu_custom_call.1} parent=1 // pred_check_branch
      %528 = sbr.rel (0) target = $region65
    $region64: #{tpu_custom_call.1} parent=1 // pred_region
      %529 = dma.done [#allocation4], 256
    $region65: #{tpu_custom_call.1} parent=1 // pred_fallthru
      _
    // Predicated region
    $region66: #{tpu_custom_call.1} parent=1 // pred_check
      _
    $region67: #{tpu_custom_call.1} parent=1 // pred_check_branch
      %531 = sbr.rel (0) target = $region69
    $region68: #{tpu_custom_call.1} parent=1 // pred_region
      %532 = dma.done [#allocation13], 32
    $region69: #{tpu_custom_call.1} parent=1 // pred_fallthru
      _
    %533 = vsyncpa [#allocation3], 1
    %534 = vsyncpa [#allocation6], 1
    %535 = vsyncpa [#allocation9], 1
    %536 = vsyncpa [#allocation4], 1
    %537 = vsyncpa [#allocation13], 1

</llo_original>
